<compile_context>
chip_gen: v7x
topology: tpu7x:2x2x1
jax: 0.10.0
libtpu: 0.0.40
codegen_flags: <defaults>
</compile_context>

<pallas_src>
import jax
import jax.numpy as jnp
from jax.experimental import pallas as pl
from jax.experimental.pallas import tpu as pltpu


# ---------------------------------------------------------------------------
# Kernels
# ---------------------------------------------------------------------------

def _unified_output_kernel_single_k(factor_ref,   # SMEM scalar-prefetch, shape (1,), f32
                                    x_ref,        # (tm, 3H) VMEM bf16 — concat(V, Ψ, τ) tile
                                    w_ref,        # (3H, tn) VMEM bf16 — W^T tile
                                    b_ref,        # (1, tn)  VMEM f32  — bias tile
                                    o_ref):       # (tm, tn) VMEM      — output tile
    """grid = (B/tm, O/tn); the whole K=3H contraction is one MXU call.
    No accumulator scratch, no init/finalize gating."""
    acc = jnp.dot(x_ref[...], w_ref[...], preferred_element_type=jnp.float32)
    o_ref[...] = ((acc + b_ref[...]) * factor_ref[0]).astype(o_ref.dtype)


def _unified_output_kernel_tiled_k(factor_ref,    # SMEM scalar-prefetch, shape (1,), f32
                                   x_ref,         # (tm, tk) VMEM bf16
                                   w_ref,         # (tk, tn) VMEM bf16
                                   b_ref,         # (1, tn)  VMEM f32
                                   o_ref,         # (tm, tn) VMEM
                                   acc_ref):      # (tm, tn) VMEM f32 scratch
    """grid = (B/tm, O/tn, 3H/tk).  NOTE: K MUST remain the innermost ("arbitrary") grid axis —
    the output index_map is constant across k, so writing o_ref before the last k step would
    emit partial sums."""
    k = pl.program_id(2)
    part = jnp.dot(x_ref[...], w_ref[...], preferred_element_type=jnp.float32)

    # Direct write on the first K step: saves a full (tm, tn) f32 zero-store + load + VPU add.
    @pl.when(k == 0)
    def _():
        acc_ref[...] = part

    @pl.when(k > 0)
    def _():
        acc_ref[...] += part

    @pl.when(k == pl.num_programs(2) - 1)
    def _():
        # f32 epilogue on the accumulator; cast only at the final store.
        o_ref[...] = ((acc_ref[...] + b_ref[...]) * factor_ref[0]).astype(o_ref.dtype)


# ---------------------------------------------------------------------------
# Tile selection helpers
# ---------------------------------------------------------------------------

def _pick_tile(dim, cap, align):
    """Full extent if it fits the cap, else the largest divisor of `dim` that is <= cap and a
    multiple of `align` (keeps the (8, 128) layout rule).  Falls back to full extent."""
    if dim <= cap:
        return dim
    for d in range(cap, align - 1, -1):
        if dim % d == 0 and d % align == 0:
            return d
    return dim


def _vmem_bytes(tm, tn, tk, k_steps, x_bytes, w_bytes, out_bytes):
    """Rough double-buffered working-set estimate for one grid step."""
    x = 2 * tm * tk * x_bytes
    w = 2 * tk * tn * w_bytes
    b = 2 * 8 * tn * 4                      # bias tile, padded to 8 sublanes
    o = 2 * tm * tn * out_bytes
    acc = tm * tn * 4 if k_steps > 1 else 0
    return x + w + b + o + acc


# ---------------------------------------------------------------------------
# Wrapper
# ---------------------------------------------------------------------------

def unified_output(v, psi, tau, t, t0, weight_t, bias, temporal_modulation,
                   *, tm=None, tn=None, tk=None, out_dtype=None):
    """v, psi, tau: (B, H); t, t0, temporal_modulation: scalars; weight_t: (3H, O)
    (pre-transposed nn.Linear weight); bias: (O,).  Returns (B, O) in `out_dtype`
    (defaults to v.dtype)."""
    B, H = v.shape
    K3, O = weight_t.shape
    assert K3 == 3 * H and psi.shape == (B, H) and tau.shape == (B, H)
    if out_dtype is None:
        out_dtype = v.dtype

    # Concat once in the wrapper -> one (B, 3H) operand, one deep K=3H contraction.
    # (For very large B, produce V/Ψ/τ as slices of one (B, 3H) buffer upstream to avoid
    #  this extra activation read+write.)
    x = jnp.concatenate([v, psi, tau], axis=-1)

    x_bytes = jnp.dtype(x.dtype).itemsize
    w_bytes = jnp.dtype(weight_t.dtype).itemsize
    o_bytes = jnp.dtype(out_dtype).itemsize

    # --- tile selection ------------------------------------------------------------------
    if tm is None or tn is None or tk is None:
        # Sweep caps from largest to smallest until the working set fits ~12 MiB (safe under
        # every generation's default scoped-VMEM limit).  Prefer tm first (cuts W re-stream),
        # then tk (collapse the K reduction), then tn.
        budget = 12 * 1024 * 1024
        candidates = [
            (256, 2048, 1024), (256, 1024, 1024), (256, 1024, 512),
            (128, 1024, 512), (128, 512, 512), (128, 512, 256),
            (128, 256, 256), (64, 256, 128), (8, 128, 128),
        ]
        tm_c = tn_c = tk_c = None
        for tm_cap, tk_cap, tn_cap in candidates:
            tm_c = tm if tm is not None else _pick_tile(B, tm_cap, 8)
            tk_c = tk if tk is not None else _pick_tile(K3, tk_cap, 128)
            tn_c = tn if tn is not None else _pick_tile(O, tn_cap, 128)
            k_steps_c = K3 // tk_c
            if _vmem_bytes(tm_c, tn_c, tk_c, k_steps_c, x_bytes, w_bytes, o_bytes) <= budget:
                break
        tm, tn, tk = tm_c, tn_c, tk_c

        # v7x megacore: ensure >= 2 "parallel" blocks on large problems so both TensorCores
        # get work — but never shrink tn below 512 (lane-dense stores / 1 KiB DMA chunks).
        if (B // tm) * (O // tn) < 2 and tn % 2 == 0 and (tn // 2) >= 512 and O % (tn // 2) == 0:
            tn //= 2

    assert B % tm == 0 and O % tn == 0 and K3 % tk == 0, \
        f"tiles must divide (B, O, 3H): got tm={tm}, tn={tn}, tk={tk} for B={B}, O={O}, 3H={K3}"

    k_steps = K3 // tk

    # --- scalar temporal factor (one scalar XLA op; scalar transcendentals are not reliably
    #     lowered inside Mosaic kernels, so keep the exp here and feed it via scalar prefetch) ---
    t_f = jnp.asarray(t, jnp.float32)
    t0_f = jnp.asarray(t0, jnp.float32)
    mod_f = jnp.asarray(temporal_modulation, jnp.float32)  # NOTE: ==0 divides by zero (matches ref)
    factor = jnp.exp(-jnp.abs(t_f - t0_f) / mod_f).reshape((1,))

    bias2d = bias.astype(jnp.float32).reshape(1, O)

    # --- grid spec -------------------------------------------------------------------------
    if k_steps == 1:
        grid_spec = pltpu.PrefetchScalarGridSpec(
            num_scalar_prefetch=1,
            grid=(B // tm, O // tn),
            in_specs=[
                pl.BlockSpec((tm, tk), lambda i, j, factor: (i, 0)),   # X tile (full K)
                pl.BlockSpec((tk, tn), lambda i, j, factor: (0, j)),   # W^T tile (full K)
                pl.BlockSpec((1, tn),  lambda i, j, factor: (0, j)),   # bias tile
            ],
            out_specs=pl.BlockSpec((tm, tn), lambda i, j, factor: (i, j)),
        )
        kernel = _unified_output_kernel_single_k
        dims = ("parallel", "parallel")
    else:
        # Reduction axis LAST (innermost) — required for the accumulate/finalize pattern.
        grid_spec = pltpu.PrefetchScalarGridSpec(
            num_scalar_prefetch=1,
            grid=(B // tm, O // tn, k_steps),
            in_specs=[
                pl.BlockSpec((tm, tk), lambda i, j, k, factor: (i, k)),
                pl.BlockSpec((tk, tn), lambda i, j, k, factor: (k, j)),
                pl.BlockSpec((1, tn),  lambda i, j, k, factor: (0, j)),
            ],
            out_specs=pl.BlockSpec((tm, tn), lambda i, j, k, factor: (i, j)),
            scratch_shapes=[pltpu.VMEM((tm, tn), jnp.float32)],
        )
        kernel = _unified_output_kernel_tiled_k
        dims = ("parallel", "parallel", "arbitrary")

    return pl.pallas_call(
        kernel,
        out_shape=jax.ShapeDtypeStruct((B, O), out_dtype),
        grid_spec=grid_spec,
        compiler_params=pltpu.CompilerParams(dimension_semantics=dims),
    )(factor, x, weight_t, bias2d)


# ---------------------------------------------------------------------------
# Reference & demo
# ---------------------------------------------------------------------------

def reference(v, psi, tau, t, t0, weight_t, bias, temporal_modulation):
    combined = jnp.concatenate([v, psi, tau], axis=-1).astype(jnp.float32)
    out = combined @ weight_t.astype(jnp.float32) + bias.astype(jnp.float32)
    factor = jnp.exp(-jnp.abs(jnp.float32(t) - jnp.float32(t0)) / jnp.float32(temporal_modulation))
    return out * factor


if __name__ == "__main__":
    key = jax.random.PRNGKey(0)
    # Small but lane-dense shapes: batch=8, hidden_dim=128, output_dim=128.
    B, H, O = 8, 128, 128

    k_v, k_p, k_t, k_w, k_b = jax.random.split(key, 5)
    v = jax.random.normal(k_v, (B, H), jnp.float32).astype(jnp.bfloat16)
    psi = jax.random.normal(k_p, (B, H), jnp.float32).astype(jnp.bfloat16)
    tau = jax.random.normal(k_t, (B, H), jnp.float32).astype(jnp.bfloat16)

    # nn.Linear(3H, O) init: uniform(-1/sqrt(3H), 1/sqrt(3H)); weight stored pre-transposed (3H, O).
    bound = 1.0 / (3 * H) ** 0.5
    weight_t = jax.random.uniform(k_w, (3 * H, O), jnp.float32, -bound, bound).astype(jnp.bfloat16)
    bias = jax.random.uniform(k_b, (O,), jnp.float32, -bound, bound)

    t = jnp.float32(2.5)
    t0 = jnp.float32(1.0)
    temporal_modulation = jnp.float32(1.0)   # nn.Parameter(torch.tensor(1.0))

    # Auto tile selection collapses K (3H=384 fits VMEM): grid = (1, 1), single MXU contraction,
    # no accumulator scratch and no grid-step overhead.
    out = unified_output(v, psi, tau, t, t0, weight_t, bias, temporal_modulation,
                         out_dtype=jnp.bfloat16)
    out = jax.block_until_ready(out)

    ref = reference(v, psi, tau, t, t0, weight_t, bias, temporal_modulation)
    assert out.shape == (B, O)
    assert jnp.allclose(out.astype(jnp.float32), ref, atol=2e-2, rtol=2e-2), "mismatch vs reference"
    print("KERNEL_OK")
</pallas_src>

<mosaic_0001>
module attributes {stable_mosaic.version = 11 : i64} {
  func.func @_unified_output_kernel_single_k(%arg0: i32, %arg1: i32, %arg2: memref<1xf32, #tpu.memory_space<smem>>, %arg3: memref<8x384xbf16, #tpu.memory_space<vmem>>, %arg4: memref<384x128xbf16, #tpu.memory_space<vmem>>, %arg5: memref<1x128xf32, #tpu.memory_space<vmem>>, %arg6: memref<8x128xbf16, #tpu.memory_space<vmem>>) attributes {dimension_semantics = [#tpu.dimension_semantics<parallel>, #tpu.dimension_semantics<parallel>], iteration_bounds = array<i64: 1, 1>, scalar_prefetch = 1 : i64, scratch_operands = 0 : i64, tpu.core_type = #tpu.core_type<tc>, window_params = [{transform_indices = @transform_0, window_bounds = array<i64: 8, 384>}, {transform_indices = @transform_1, window_bounds = array<i64: 384, 128>}, {transform_indices = @transform_2, window_bounds = array<i64: 1, 128>}, {transform_indices = @transform_3, window_bounds = array<i64: 8, 128>}]} {
    %c0 = arith.constant 0 : index
    %c0_0 = arith.constant 0 : index
    %0 = vector.load %arg3[%c0, %c0_0] : memref<8x384xbf16, #tpu.memory_space<vmem>>, vector<8x384xbf16>
    %c0_1 = arith.constant 0 : index
    %c0_2 = arith.constant 0 : index
    %1 = vector.load %arg4[%c0_1, %c0_2] : memref<384x128xbf16, #tpu.memory_space<vmem>>, vector<384x128xbf16>
    %cst = arith.constant dense<0.000000e+00> : vector<8x128xf32>
    %2 = tpu.matmul %0, %1, %cst {dimension_numbers = #tpu.dot_dimension_numbers<[1], [0], [0], [1], [0, 0, 1, 1], [], []>} : vector<8x384xbf16>, vector<384x128xbf16>, vector<8x128xf32> -> vector<8x128xf32>
    %c0_3 = arith.constant 0 : index
    %c0_4 = arith.constant 0 : index
    %3 = vector.load %arg5[%c0_3, %c0_4] : memref<1x128xf32, #tpu.memory_space<vmem>>, vector<1x128xf32>
    %4 = vector.broadcast %3 : vector<1x128xf32> to vector<8x128xf32>
    %5 = arith.addf %2, %4 : vector<8x128xf32>
    %c0_5 = arith.constant 0 : index
    %6 = memref.load %arg2[%c0_5] : memref<1xf32, #tpu.memory_space<smem>>
    %7 = vector.broadcast %6 : f32 to vector<8x128xf32>
    %8 = arith.mulf %5, %7 : vector<8x128xf32>
    %9 = arith.truncf %8 : vector<8x128xf32> to vector<8x128xbf16>
    %c0_6 = arith.constant 0 : index
    %c0_7 = arith.constant 0 : index
    %10 = vector.load %arg6[%c0_6, %c0_7] : memref<8x128xbf16, #tpu.memory_space<vmem>>, vector<8x128xbf16>
    tpu.vector_store %arg6[%c0_6, %c0_7], %9 {strides = array<i32>} : memref<8x128xbf16, #tpu.memory_space<vmem>>, vector<8x128xbf16>,
    return
  }
  func.func @transform_0(%arg0: i32, %arg1: i32, %arg2: memref<1xf32, #tpu.memory_space<smem>>) -> (i32, i32) {
    %c0_i32 = arith.constant 0 : i32
    %c0_i32_0 = arith.constant 0 : i32
    return %arg0, %c0_i32 : i32, i32
  }
  func.func @transform_1(%arg0: i32, %arg1: i32, %arg2: memref<1xf32, #tpu.memory_space<smem>>) -> (i32, i32) {
    %c0_i32 = arith.constant 0 : i32
    %c0_i32_0 = arith.constant 0 : i32
    return %c0_i32, %arg1 : i32, i32
  }
  func.func @transform_2(%arg0: i32, %arg1: i32, %arg2: memref<1xf32, #tpu.memory_space<smem>>) -> (i32, i32) {
    %c0_i32 = arith.constant 0 : i32
    %c0_i32_0 = arith.constant 0 : i32
    return %c0_i32, %arg1 : i32, i32
  }
  func.func @transform_3(%arg0: i32, %arg1: i32, %arg2: memref<1xf32, #tpu.memory_space<smem>>) -> (i32, i32) {
    %c0_i32 = arith.constant 0 : i32
    return %arg0, %arg1 : i32, i32
  }
}

</mosaic_0001>

<llo_original>
// kernel: tpu_custom_call.1
$region0: #{tpu_custom_call.1}
  #allocation0 [shape = 'u32[]', space=smem, size = 0x4, offset = 0x4, fixed_abs, tag = 'smem constant byte address 0x4 - core index']
  #allocation1 [shape = 'u32[144,128]{1,0:T(1,128)}', space=vmem, size = 0x12000, scoped, tag = 'internal scratch']
  #allocation2 [shape = 's32[1]{0}', space=sflag, size = 0x4, scoped, tag = 'scoped memory for tpu_custom_call.1']
  #allocation3 [shape = 'f32[1]{0:T(128)S(6)}', space=smem, size = 0x200, scoped, tag = 'prefetched SMEM operand 0']
  %s0 = inlined_call_operand.<no memory space> [shape: f32[1], index: 0, kind: input, shape index: {}]
  %s1 = inlined_call_operand.hbm [shape: bf16[8,384], index: 1, kind: input, shape index: {}]
  %s2 = inlined_call_operand.hbm [shape: bf16[384,128], index: 2, kind: input, shape index: {}]
  %s3 = inlined_call_operand.vmem [shape: f32[1,128], index: 3, kind: input, shape index: {}]
  %s4 = inlined_call_operand.hbm [shape: bf16[8,128], index: 4, kind: output, shape index: {}]
  %s5 = sld [smem:[#allocation0]]
  $region30: #{tpu_custom_call.1} parent=0
    _
  %s7 = ssub.s32 1, %s5
  %s8 = scalar_select 0, %s7, %s5
  %9 = sst [smem:[#allocation3]] %s0
  $region1: #{tpu_custom_call.1} parent=0
    #allocation4 [shape = 'u8[6144]{0}', space=vmem, size = 0x1800, scoped, tag = 'input window, operand 1, single buffered']
    #allocation5 [shape = 's32[1]{0}', space=sflag, size = 0x4, scoped, tag = 'scoped memory for tpu_custom_call.1']
    #allocation6 [shape = 's32[1]{0}', space=sflag, size = 0x4, scoped, tag = 'scoped memory for tpu_custom_call.1']
    #allocation7 [shape = 'u8[98304]{0}', space=vmem, size = 0x18000, scoped, tag = 'input window, operand 2, single buffered']
    #allocation8 [shape = 's32[1]{0}', space=sflag, size = 0x4, scoped, tag = 'scoped memory for tpu_custom_call.1']
    #allocation9 [shape = 'u8[2048]{0}', space=vmem, size = 0x800, scoped, tag = 'output window, operand 0, single buffered']
    %10 = vsyncpa [#allocation5], 0
    %11 = vsyncpa [#allocation8], 0
    %12 = vsyncpa [#allocation6], 0
    // Predicated region
    $region2: #{tpu_custom_call.1} parent=1 // pred_check
      _
    $region3: #{tpu_custom_call.1} parent=1 // pred_check_branch
      %14 = sbr.rel (0) target = $region5
    $region4: #{tpu_custom_call.1} parent=1 // pred_region
      %s16 = ssub.s32 192, 192
      %17 = vsyncadd [#allocation5], %s16
      %s19 = sshll.u32 [#allocation4], 4
      %s20 = int_to_ptr.vmem [resolvable:$true] %s19
      %22 = dma.hbm_to_vmem [thread:$0]  %s1, 192, %s20, [#allocation5]
    $region5: #{tpu_custom_call.1} parent=1 // pred_fallthru
      _
    // Predicated region
    $region6: #{tpu_custom_call.1} parent=1 // pred_check
      _
    $region7: #{tpu_custom_call.1} parent=1 // pred_check_branch
      %24 = sbr.rel (0) target = $region9
    $region8: #{tpu_custom_call.1} parent=1 // pred_region
      %s26 = ssub.s32 3072, 3072
      %27 = vsyncadd [#allocation8], %s26
      %s28 = sshll.u32 [#allocation7], 4
      %s29 = int_to_ptr.vmem [resolvable:$true] %s28
      %34 = dma.hbm_to_vmem [thread:$0]  %s2, 3072, %s29, [#allocation8], 64, 64, 4
    $region9: #{tpu_custom_call.1} parent=1 // pred_fallthru
      _
    // Predicated region
    $region10: #{tpu_custom_call.1} parent=1 // pred_check
      _
    $region11: #{tpu_custom_call.1} parent=1 // pred_check_branch
      %36 = sbr.rel (0) target = $region13
    $region12: #{tpu_custom_call.1} parent=1 // pred_region
      _
    $region13: #{tpu_custom_call.1} parent=1 // pred_fallthru
      _
    // Predicated region
    $region14: #{tpu_custom_call.1} parent=1 // pred_check
      _
    $region15: #{tpu_custom_call.1} parent=1 // pred_check_branch
      %38 = sbr.rel (0) target = $region17
    $region16: #{tpu_custom_call.1} parent=1 // pred_region
      %39 = dma.done [#allocation5], 192
    $region17: #{tpu_custom_call.1} parent=1 // pred_fallthru
      _
    // Predicated region
    $region18: #{tpu_custom_call.1} parent=1 // pred_check
      _
    $region19: #{tpu_custom_call.1} parent=1 // pred_check_branch
      %41 = sbr.rel (0) target = $region21
    $region20: #{tpu_custom_call.1} parent=1 // pred_region
      %42 = dma.done [#allocation8], 3072
    $region21: #{tpu_custom_call.1} parent=1 // pred_fallthru
      _
    %v44 = vld [vmem:[#allocation4] sm:$0xff]
    %v45 = vld [vmem:[#allocation4 + $0x8] sm:$0xf]
    %v46 = vld [vmem:[#allocation7] sm:$0xf]
    %v47 = vld [vmem:[#allocation7 + $0x4] sm:$0xf]
    %v48 = vld [vmem:[#allocation7 + $0x8] sm:$0xf]
    %v49 = vld [vmem:[#allocation7 + $0xc] sm:$0xf]
    %v50 = vld [vmem:[#allocation7 + $0x10] sm:$0xf]
    %v51 = vld [vmem:[#allocation7 + $0x14] sm:$0xf]
    %v52 = vld [vmem:[#allocation7 + $0x18] sm:$0xf]
    %v53 = vld [vmem:[#allocation7 + $0x1c] sm:$0xf]
    %v54 = vld [vmem:[#allocation7 + $0x20] sm:$0xf]
    %v55 = vld [vmem:[#allocation7 + $0x24] sm:$0xf]
    %v56 = vld [vmem:[#allocation7 + $0x28] sm:$0xf]
    %v57 = vld [vmem:[#allocation7 + $0x2c] sm:$0xf]
    %v58 = vld [vmem:[#allocation7 + $0x30] sm:$0xf]
    %v59 = vld [vmem:[#allocation7 + $0x34] sm:$0xf]
    %v60 = vld [vmem:[#allocation7 + $0x38] sm:$0xf]
    %v61 = vld [vmem:[#allocation7 + $0x3c] sm:$0xf]
    %v62 = vld [vmem:[#allocation7 + $0x40] sm:$0xf]
    %v63 = vld [vmem:[#allocation7 + $0x44] sm:$0xf]
    %v64 = vld [vmem:[#allocation7 + $0x48] sm:$0xf]
    %v65 = vld [vmem:[#allocation7 + $0x4c] sm:$0xf]
    %v66 = vld [vmem:[#allocation7 + $0x50] sm:$0xf]
    %v67 = vld [vmem:[#allocation7 + $0x54] sm:$0xf]
    %v68 = vld [vmem:[#allocation7 + $0x58] sm:$0xf]
    %v69 = vld [vmem:[#allocation7 + $0x5c] sm:$0xf]
    %v70 = vld [vmem:[#allocation7 + $0x60] sm:$0xf]
    %v71 = vld [vmem:[#allocation7 + $0x64] sm:$0xf]
    %v72 = vld [vmem:[#allocation7 + $0x68] sm:$0xf]
    %v73 = vld [vmem:[#allocation7 + $0x6c] sm:$0xf]
    %v74 = vld [vmem:[#allocation7 + $0x70] sm:$0xf]
    %v75 = vld [vmem:[#allocation7 + $0x74] sm:$0xf]
    %v76 = vld [vmem:[#allocation7 + $0x78] sm:$0xf]
    %v77 = vld [vmem:[#allocation7 + $0x7c] sm:$0xf]
    %v78 = vld [vmem:[#allocation7 + $0x80] sm:$0xf]
    %v79 = vld [vmem:[#allocation7 + $0x84] sm:$0xf]
    %v80 = vld [vmem:[#allocation7 + $0x88] sm:$0xf]
    %v81 = vld [vmem:[#allocation7 + $0x8c] sm:$0xf]
    %v82 = vld [vmem:[#allocation7 + $0x90] sm:$0xf]
    %v83 = vld [vmem:[#allocation7 + $0x94] sm:$0xf]
    %v84 = vld [vmem:[#allocation7 + $0x98] sm:$0xf]
    %v85 = vld [vmem:[#allocation7 + $0x9c] sm:$0xf]
    %v86 = vld [vmem:[#allocation7 + $0xa0] sm:$0xf]
    %v87 = vld [vmem:[#allocation7 + $0xa4] sm:$0xf]
    %v88 = vld [vmem:[#allocation7 + $0xa8] sm:$0xf]
    %v89 = vld [vmem:[#allocation7 + $0xac] sm:$0xf]
    %v90 = vld [vmem:[#allocation7 + $0xb0] sm:$0xf]
    %v91 = vld [vmem:[#allocation7 + $0xb4] sm:$0xf]
    %v92 = vld [vmem:[#allocation7 + $0xb8] sm:$0xf]
    %v93 = vld [vmem:[#allocation7 + $0xbc] sm:$0xf]
    %v94 = vld [vmem:[%s3] sm:$0x1]
    %v96 = vlaneseq
    %v97 = vshrl.u32 %v96, 7
    %v98 = vsub.s32 0, %v97
    %v99 = vrot.slane %v94, %v98
    %v103 = vunpack.c.l.b16 %v44
    %v104 = vunpack.c.h.b16 %v44
    %v105 = vunpack.c.l.b16 %v45
    %v106 = vpack.c.b16 %v103, %v103
    %v107 = vpack.c.b16 %v104, %v104
    %v108 = vpack.c.b16 %v105, %v105
    %v160 = vunpack.c.l.b16 %v46
    %v161 = vunpack.c.l.b16 %v47
    %v162 = vunpack.c.l.b16 %v48
    %v163 = vunpack.c.l.b16 %v49
    %v164 = vunpack.c.l.b16 %v50
    %v165 = vunpack.c.l.b16 %v51
    %v166 = vunpack.c.l.b16 %v52
    %v167 = vunpack.c.l.b16 %v53
    %v168 = vunpack.c.l.b16 %v54
    %v169 = vunpack.c.l.b16 %v55
    %v170 = vunpack.c.l.b16 %v56
    %v171 = vunpack.c.l.b16 %v57
    %v172 = vunpack.c.l.b16 %v58
    %v173 = vunpack.c.l.b16 %v59
    %v174 = vunpack.c.l.b16 %v60
    %v175 = vunpack.c.l.b16 %v61
    %v176 = vunpack.c.l.b16 %v62
    %v177 = vunpack.c.l.b16 %v63
    %v178 = vunpack.c.l.b16 %v64
    %v179 = vunpack.c.l.b16 %v65
    %v180 = vunpack.c.l.b16 %v66
    %v181 = vunpack.c.l.b16 %v67
    %v182 = vunpack.c.l.b16 %v68
    %v183 = vunpack.c.l.b16 %v69
    %v184 = vunpack.c.l.b16 %v70
    %v185 = vunpack.c.l.b16 %v71
    %v186 = vunpack.c.l.b16 %v72
    %v187 = vunpack.c.l.b16 %v73
    %v188 = vunpack.c.l.b16 %v74
    %v189 = vunpack.c.l.b16 %v75
    %v190 = vunpack.c.l.b16 %v76
    %v191 = vunpack.c.l.b16 %v77
    %v192 = vunpack.c.l.b16 %v78
    %v193 = vunpack.c.l.b16 %v79
    %v194 = vunpack.c.l.b16 %v80
    %v195 = vunpack.c.l.b16 %v81
    %v196 = vunpack.c.l.b16 %v82
    %v197 = vunpack.c.l.b16 %v83
    %v198 = vunpack.c.l.b16 %v84
    %v199 = vunpack.c.l.b16 %v85
    %v200 = vunpack.c.l.b16 %v86
    %v201 = vunpack.c.l.b16 %v87
    %v202 = vunpack.c.l.b16 %v88
    %v203 = vunpack.c.l.b16 %v89
    %v204 = vunpack.c.l.b16 %v90
    %v205 = vunpack.c.l.b16 %v91
    %v206 = vunpack.c.l.b16 %v92
    %v207 = vunpack.c.l.b16 %v93
    %v208 = vpack.c.b16 %v161, %v160
    %v209 = vpack.c.b16 %v163, %v162
    %v210 = vpack.c.b16 %v165, %v164
    %v211 = vpack.c.b16 %v167, %v166
    %v212 = vpack.c.b16 %v169, %v168
    %v213 = vpack.c.b16 %v171, %v170
    %v214 = vpack.c.b16 %v173, %v172
    %v215 = vpack.c.b16 %v175, %v174
    %v216 = vpack.c.b16 %v177, %v176
    %v217 = vpack.c.b16 %v179, %v178
    %v218 = vpack.c.b16 %v181, %v180
    %v219 = vpack.c.b16 %v183, %v182
    %v220 = vpack.c.b16 %v185, %v184
    %v221 = vpack.c.b16 %v187, %v186
    %v222 = vpack.c.b16 %v189, %v188
    %v223 = vpack.c.b16 %v191, %v190
    %v224 = vpack.c.b16 %v193, %v192
    %v225 = vpack.c.b16 %v195, %v194
    %v226 = vpack.c.b16 %v197, %v196
    %v227 = vpack.c.b16 %v199, %v198
    %v228 = vpack.c.b16 %v201, %v200
    %v229 = vpack.c.b16 %v203, %v202
    %v230 = vpack.c.b16 %v205, %v204
    %v231 = vpack.c.b16 %v207, %v206
    %256 = vmatprep.subr.bf16.mxu0 0
    %257 = vmatpush1.bf16.msra.mxu0 %v208
    %258 = vmatprep.subr.bf16.mxu0 0
    %259 = vmatpush1.bf16.msra.mxu0 %v209
    %260 = vmatprep.subr.bf16.mxu0 0
    %261 = vmatpush1.bf16.msra.mxu0 %v210
    %262 = vmatprep.subr.bf16.mxu0 0
    %263 = vmatpush1.bf16.msra.mxu0 %v211
    %264 = vmatprep.subr.bf16.mxu0 0
    %265 = vmatpush1.bf16.msra.mxu0 %v212
    %266 = vmatprep.subr.bf16.mxu0 0
    %267 = vmatpush1.bf16.msra.mxu0 %v213
    %268 = vmatprep.subr.bf16.mxu0 0
    %269 = vmatpush1.bf16.msra.mxu0 %v214
    %270 = vmatprep.subr.bf16.mxu0 0
    %271 = vmatpush1.bf16.msra.mxu0 %v215
    %272 = vmatprep.subr.bf16.mxu0 0
    %273 = vmatpush1.bf16.msra.mxu0 %v216
    %274 = vmatprep.subr.bf16.mxu0 0
    %275 = vmatpush1.bf16.msra.mxu0 %v217
    %276 = vmatprep.subr.bf16.mxu0 0
    %277 = vmatpush1.bf16.msra.mxu0 %v218
    %278 = vmatprep.subr.bf16.mxu0 0
    %279 = vmatpush1.bf16.msra.mxu0 %v219
    %280 = vmatprep.subr.bf16.mxu0 0
    %281 = vmatpush1.bf16.msra.mxu0 %v220
    %282 = vmatprep.subr.bf16.mxu0 0
    %283 = vmatpush1.bf16.msra.mxu0 %v221
    %284 = vmatprep.subr.bf16.mxu0 0
    %285 = vmatpush1.bf16.msra.mxu0 %v222
    %286 = vmatprep.subr.bf16.mxu0 0
    %287 = vmatpush1.bf16.msra.mxu0 %v223
    %288 = vmatprep.mubr.bf16.mxu0 %v107
    %289 = vmatmul.mubr.bf16.gmra.mrb[0].mxu0 %v106
    %v290 = vpop.f32.mrb[0].mxu0
    %v291 = vadd.f32 %v99, %v290
    %v292 = vpop.f32.mrb[0].mxu0
    %v293 = vpop.f32.mrb[0].mxu0
    %v294 = vpop.f32.mrb[0].mxu0
    %295 = vdwg.mxu0
    %296 = vmatprep.subr.bf16.mxu0 0
    %297 = vmatpush1.bf16.msra.mxu0 %v224
    %298 = vmatprep.subr.bf16.mxu0 0
    %299 = vmatpush1.bf16.msra.mxu0 %v225
    %300 = vmatprep.subr.bf16.mxu0 0
    %301 = vmatpush1.bf16.msra.mxu0 %v226
    %302 = vmatprep.subr.bf16.mxu0 0
    %303 = vmatpush1.bf16.msra.mxu0 %v227
    %304 = vmatprep.subr.bf16.mxu0 0
    %305 = vmatpush1.bf16.msra.mxu0 %v228
    %306 = vmatprep.subr.bf16.mxu0 0
    %307 = vmatpush1.bf16.msra.mxu0 %v229
    %308 = vmatprep.subr.bf16.mxu0 0
    %309 = vmatpush1.bf16.msra.mxu0 %v230
    %310 = vmatprep.subr.bf16.mxu0 0
    %311 = vmatpush1.bf16.msra.mxu0 %v231
    %312 = vmatprep.subr.bf16.mxu0 0
    %313 = vmatpush1.bf16.msra.mxu0 0
    %314 = vmatprep.subr.bf16.mxu0 0
    %315 = vmatpush1.bf16.msra.mxu0 0
    %316 = vmatprep.subr.bf16.mxu0 0
    %317 = vmatpush1.bf16.msra.mxu0 0
    %318 = vmatprep.subr.bf16.mxu0 0
    %319 = vmatpush1.bf16.msra.mxu0 0
    %320 = vmatprep.subr.bf16.mxu0 0
    %321 = vmatpush1.bf16.msra.mxu0 0
    %322 = vmatprep.subr.bf16.mxu0 0
    %323 = vmatpush1.bf16.msra.mxu0 0
    %324 = vmatprep.subr.bf16.mxu0 0
    %325 = vmatpush1.bf16.msra.mxu0 0
    %326 = vmatprep.subr.bf16.mxu0 0
    %327 = vmatpush1.bf16.msra.mxu0 0
    %328 = vmatprep.mubr.bf16.mxu0 0
    %329 = vmatmul.mubr.bf16.gmra.mrb[0].mxu0 %v108
    %v330 = vpop.f32.mrb[0].mxu0
    %v331 = vadd.f32 %v291, %v330
    %v332 = vpop.f32.mrb[0].mxu0
    %v333 = vpop.f32.mrb[0].mxu0
    %v334 = vpop.f32.mrb[0].mxu0
    %335 = vdwg.mxu0
    %s336 = sld [smem:[#allocation3]]
    %v337 = vstv %s336
    %v338 = vmul.f32 %v331, %v337
    %v339 = vpack.c.bf16 %v338, %v338
    %340 = vst [vmem:[#allocation9] sm:$0xf] %v339
    // Predicated region
    $region22: #{tpu_custom_call.1} parent=1 // pred_check
      _
    $region23: #{tpu_custom_call.1} parent=1 // pred_check_branch
      %342 = sbr.rel (0) target = $region25
    $region24: #{tpu_custom_call.1} parent=1 // pred_region
      %s344 = ssub.s32 64, 64
      %345 = vsyncadd [#allocation6], %s344
      %s347 = sshll.u32 [#allocation9], 4
      %s348 = int_to_ptr.vmem [resolvable:$true] %s347
      %350 = dma.vmem_to_hbm [thread:$0]  %s348, 64, %s4, [#allocation6]
    $region25: #{tpu_custom_call.1} parent=1 // pred_fallthru
      _
    // Predicated region
    $region26: #{tpu_custom_call.1} parent=1 // pred_check
      _
    $region27: #{tpu_custom_call.1} parent=1 // pred_check_branch
      %352 = sbr.rel (0) target = $region29
    $region28: #{tpu_custom_call.1} parent=1 // pred_region
      %353 = dma.done [#allocation6], 64
    $region29: #{tpu_custom_call.1} parent=1 // pred_fallthru
      _
    %354 = vsyncpa [#allocation5], 1
    %355 = vsyncpa [#allocation8], 1
    %356 = vsyncpa [#allocation6], 1

</llo_original>
